<compile_context>
chip_gen: v6e
topology: v6e:2x2x1
jax: 0.10.0
libtpu: 0.0.40
codegen_flags: <defaults>
</compile_context>

<pallas_src>
import functools

import jax
import jax.numpy as jnp
from jax.experimental import pallas as pl
from jax.experimental.pallas import tpu as pltpu

LN_EPS = 1e-12


def _self_output_kernel(x_ref, res_ref, w_ref, b_ref, g_ref, beta_ref, o_ref):
    # x_ref:   (tm, H)  attention-output rows (native dtype)
    # res_ref: (tm, H)  residual rows (input_tensor)
    # w_ref:   (H, H)   dense weight in torch (out, in) layout — resident in VMEM
    # b_ref:   (1, H)   dense bias
    # g_ref:   (1, H)   LayerNorm weight (gamma)
    # beta_ref:(1, H)   LayerNorm bias

    # Dense: y = x @ W^T. Contract x dim 1 with W dim 1 so the MXU takes the
    # transposed operand directly; accumulate in f32.
    h = jax.lax.dot_general(
        x_ref[...], w_ref[...],
        dimension_numbers=(((1,), (1,)), ((), ())),
        preferred_element_type=jnp.float32,
    )

    # Hoist the (1, H) parameter loads/broadcasts once (JAX does not CSE them).
    b = b_ref[...].astype(jnp.float32)
    g = g_ref[...].astype(jnp.float32)
    beta = beta_ref[...].astype(jnp.float32)

    # Dropout: eval-mode identity.

    # Bias + residual add (f32).
    h = h + b + res_ref[...].astype(jnp.float32)

    # LayerNorm over last dim (TF style: eps inside sqrt, biased variance).
    u = jnp.mean(h, axis=-1, keepdims=True)
    d = h - u
    s = jnp.mean(d * d, axis=-1, keepdims=True)
    inv = jax.lax.rsqrt(s + LN_EPS)            # EUP path
    out = d * (inv * g) + beta                 # gamma folded into the normalize mul

    o_ref[...] = out.astype(o_ref.dtype)


def _round_up(x, m):
    return ((x + m - 1) // m) * m


@functools.partial(jax.jit, static_argnames=("block_m",))
def bert_self_output(hidden_states, input_tensor, dense_w, dense_b, ln_w, ln_b,
                     block_m=256):
    """hidden_states/input_tensor: [B, S, H]. dense_w: [H, H] torch layout (out, in)."""
    B, S, H = hidden_states.shape
    M = B * S

    # Effective row tile: as large as requested but never larger than the
    # sublane-rounded row count; always a multiple of 8 sublanes.
    tm = min(block_m, _round_up(M, 8))
    tm = max(8, (tm // 8) * 8)
    M_pad = _round_up(M, tm)

    x2 = hidden_states.reshape(M, H)
    r2 = input_tensor.reshape(M, H)
    if M_pad != M:
        pad = ((0, M_pad - M), (0, 0))
        x2 = jnp.pad(x2, pad)
        r2 = jnp.pad(r2, pad)

    b2 = dense_b.reshape(1, H)
    g2 = ln_w.reshape(1, H)
    beta2 = ln_b.reshape(1, H)

    grid = (M_pad // tm,)

    itemsize = jnp.dtype(hidden_states.dtype).itemsize
    cost = pl.CostEstimate(
        flops=2 * M_pad * H * H,
        transcendentals=M_pad,                                    # one rsqrt per row
        bytes_accessed=(3 * M_pad * H + H * H + 3 * H) * itemsize,
    )

    # VMEM budget: double-buffered x/res/out tiles + resident weight + params + slack.
    vmem_bytes = (2 * 3 * tm * H + 2 * H * H + 8 * H) * itemsize + (1 << 20)
    vmem_limit = int(min(max(vmem_bytes, 32 * 1024 * 1024), 100 * 1024 * 1024))

    out = pl.pallas_call(
        _self_output_kernel,
        out_shape=jax.ShapeDtypeStruct((M_pad, H), hidden_states.dtype),
        grid_spec=pltpu.PrefetchScalarGridSpec(
            num_scalar_prefetch=0,
            grid=grid,
            in_specs=[
                pl.BlockSpec((tm, H), lambda i: (i, 0)),   # x rows
                pl.BlockSpec((tm, H), lambda i: (i, 0)),   # residual rows
                pl.BlockSpec((H, H), lambda i: (0, 0)),    # dense weight (resident)
                pl.BlockSpec((1, H), lambda i: (0, 0)),    # dense bias
                pl.BlockSpec((1, H), lambda i: (0, 0)),    # LN gamma
                pl.BlockSpec((1, H), lambda i: (0, 0)),    # LN beta
            ],
            out_specs=pl.BlockSpec((tm, H), lambda i: (i, 0)),
        ),
        compiler_params=pltpu.CompilerParams(
            dimension_semantics=("parallel",),
            vmem_limit_bytes=vmem_limit,
        ),
        cost_estimate=cost,
    )(x2, r2, dense_w, b2, g2, beta2)

    if M_pad != M:
        out = out[:M]
    return out.reshape(B, S, H)


def _reference(hidden_states, input_tensor, dense_w, dense_b, ln_w, ln_b):
    h = jnp.einsum("bsh,oh->bso", hidden_states, dense_w) + dense_b
    h = h + input_tensor
    u = jnp.mean(h, axis=-1, keepdims=True)
    s = jnp.mean((h - u) ** 2, axis=-1, keepdims=True)
    y = (h - u) / jnp.sqrt(s + LN_EPS)
    return ln_w * y + ln_b


if __name__ == "__main__":
    B, S, H = 2, 8, 32
    key = jax.random.PRNGKey(0)
    k1, k2, k3, k4 = jax.random.split(key, 4)

    hidden_states = jax.random.normal(k1, (B, S, H), dtype=jnp.float32)
    input_tensor = jax.random.normal(k2, (B, S, H), dtype=jnp.float32)

    # Deterministic parameter init (shapes from nn.Linear(H, H) / BertLayerNorm(H)).
    dense_w = jax.random.normal(k3, (H, H), dtype=jnp.float32) * 0.02   # torch (out, in)
    dense_b = jax.random.normal(k4, (H,), dtype=jnp.float32) * 0.02
    ln_w = jnp.ones((H,), dtype=jnp.float32)
    ln_b = jnp.zeros((H,), dtype=jnp.float32)

    out = bert_self_output(hidden_states, input_tensor, dense_w, dense_b, ln_w, ln_b)
    out = jax.block_until_ready(out)

    ref = _reference(hidden_states, input_tensor, dense_w, dense_b, ln_w, ln_b)
    assert out.shape == (B, S, H)
    assert jnp.allclose(out, ref, atol=1e-4, rtol=1e-4), "mismatch vs reference"

    print("KERNEL_OK")
</pallas_src>

<mosaic_0001>
module attributes {stable_mosaic.version = 11 : i64} {
  func.func @_self_output_kernel(%arg0: i32, %arg1: memref<16x32xf32, #tpu.memory_space<vmem>>, %arg2: memref<16x32xf32, #tpu.memory_space<vmem>>, %arg3: memref<32x32xf32, #tpu.memory_space<vmem>>, %arg4: memref<1x32xf32, #tpu.memory_space<vmem>>, %arg5: memref<1x32xf32, #tpu.memory_space<vmem>>, %arg6: memref<1x32xf32, #tpu.memory_space<vmem>>, %arg7: memref<16x32xf32, #tpu.memory_space<vmem>>) attributes {dimension_semantics = [#tpu.dimension_semantics<parallel>], iteration_bounds = array<i64: 1>, scalar_prefetch = 0 : i64, scratch_operands = 0 : i64, tpu.core_type = #tpu.core_type<tc>, window_params = [{transform_indices = @transform_0, window_bounds = array<i64: 16, 32>}, {transform_indices = @transform_1, window_bounds = array<i64: 16, 32>}, {pipeline_mode = #tpu.pipeline_mode<synchronous>, transform_indices = @transform_2, window_bounds = array<i64: 32, 32>}, {pipeline_mode = #tpu.pipeline_mode<synchronous>, transform_indices = @transform_3, window_bounds = array<i64: 1, 32>}, {pipeline_mode = #tpu.pipeline_mode<synchronous>, transform_indices = @transform_4, window_bounds = array<i64: 1, 32>}, {pipeline_mode = #tpu.pipeline_mode<synchronous>, transform_indices = @transform_5, window_bounds = array<i64: 1, 32>}, {transform_indices = @transform_6, window_bounds = array<i64: 16, 32>}]} {
    %c0 = arith.constant 0 : index
    %c0_0 = arith.constant 0 : index
    %0 = vector.load %arg1[%c0, %c0_0] : memref<16x32xf32, #tpu.memory_space<vmem>>, vector<16x32xf32>
    %c0_1 = arith.constant 0 : index
    %c0_2 = arith.constant 0 : index
    %1 = vector.load %arg3[%c0_1, %c0_2] : memref<32x32xf32, #tpu.memory_space<vmem>>, vector<32x32xf32>
    %cst = arith.constant dense<0.000000e+00> : vector<16x32xf32>
    %2 = tpu.matmul %0, %1, %cst {dimension_numbers = #tpu.dot_dimension_numbers<[1], [1], [0], [0], [0, 0, 1, 0], [], []>} : vector<16x32xf32>, vector<32x32xf32>, vector<16x32xf32> -> vector<16x32xf32>
    %c0_3 = arith.constant 0 : index
    %c0_4 = arith.constant 0 : index
    %3 = vector.load %arg4[%c0_3, %c0_4] : memref<1x32xf32, #tpu.memory_space<vmem>>, vector<1x32xf32>
    %c0_5 = arith.constant 0 : index
    %c0_6 = arith.constant 0 : index
    %4 = vector.load %arg5[%c0_5, %c0_6] : memref<1x32xf32, #tpu.memory_space<vmem>>, vector<1x32xf32>
    %c0_7 = arith.constant 0 : index
    %c0_8 = arith.constant 0 : index
    %5 = vector.load %arg6[%c0_7, %c0_8] : memref<1x32xf32, #tpu.memory_space<vmem>>, vector<1x32xf32>
    %6 = vector.broadcast %3 : vector<1x32xf32> to vector<16x32xf32>
    %7 = arith.addf %2, %6 : vector<16x32xf32>
    %c0_9 = arith.constant 0 : index
    %c0_10 = arith.constant 0 : index
    %8 = vector.load %arg2[%c0_9, %c0_10] : memref<16x32xf32, #tpu.memory_space<vmem>>, vector<16x32xf32>
    %9 = arith.addf %7, %8 : vector<16x32xf32>
    %cst_11 = arith.constant dense<0.000000e+00> : vector<16xf32>
    %10 = vector.multi_reduction <add>, %9, %cst_11 [1] : vector<16x32xf32> to vector<16xf32>
    %11 = vector.shape_cast %10 : vector<16xf32> to vector<16x1xf32>
    %cst_12 = arith.constant 3.200000e+01 : f32
    %12 = vector.broadcast %cst_12 : f32 to vector<16x1xf32>
    %13 = arith.divf %11, %12 : vector<16x1xf32>
    %14 = vector.broadcast %13 : vector<16x1xf32> to vector<16x32xf32>
    %15 = arith.subf %9, %14 : vector<16x32xf32>
    %16 = arith.mulf %15, %15 : vector<16x32xf32>
    %cst_13 = arith.constant dense<0.000000e+00> : vector<16xf32>
    %17 = vector.multi_reduction <add>, %16, %cst_13 [1] : vector<16x32xf32> to vector<16xf32>
    %18 = vector.shape_cast %17 : vector<16xf32> to vector<16x1xf32>
    %cst_14 = arith.constant 3.200000e+01 : f32
    %19 = vector.broadcast %cst_14 : f32 to vector<16x1xf32>
    %20 = arith.divf %18, %19 : vector<16x1xf32>
    %cst_15 = arith.constant 9.99999996E-13 : f32
    %21 = vector.broadcast %cst_15 : f32 to vector<16x1xf32>
    %22 = arith.addf %20, %21 : vector<16x1xf32>
    %23 = math.rsqrt %22 : vector<16x1xf32>
    %24 = vector.broadcast %23 : vector<16x1xf32> to vector<16x32xf32>
    %25 = vector.broadcast %4 : vector<1x32xf32> to vector<16x32xf32>
    %26 = arith.mulf %24, %25 : vector<16x32xf32>
    %27 = arith.mulf %15, %26 : vector<16x32xf32>
    %28 = vector.broadcast %5 : vector<1x32xf32> to vector<16x32xf32>
    %29 = arith.addf %27, %28 : vector<16x32xf32>
    %c0_16 = arith.constant 0 : index
    %c0_17 = arith.constant 0 : index
    %30 = vector.load %arg7[%c0_16, %c0_17] : memref<16x32xf32, #tpu.memory_space<vmem>>, vector<16x32xf32>
    tpu.vector_store %arg7[%c0_16, %c0_17], %29 {strides = array<i32>} : memref<16x32xf32, #tpu.memory_space<vmem>>, vector<16x32xf32>,
    return
  }
  func.func @transform_0(%arg0: i32) -> (i32, i32) {
    %c0_i32 = arith.constant 0 : i32
    %c0_i32_0 = arith.constant 0 : i32
    return %arg0, %c0_i32 : i32, i32
  }
  func.func @transform_1(%arg0: i32) -> (i32, i32) {
    %c0_i32 = arith.constant 0 : i32
    %c0_i32_0 = arith.constant 0 : i32
    return %arg0, %c0_i32 : i32, i32
  }
  func.func @transform_2(%arg0: i32) -> (i32, i32) {
    %c0_i32 = arith.constant 0 : i32
    %c0_i32_0 = arith.constant 0 : i32
    %c0_i32_1 = arith.constant 0 : i32
    return %c0_i32, %c0_i32_0 : i32, i32
  }
  func.func @transform_3(%arg0: i32) -> (i32, i32) {
    %c0_i32 = arith.constant 0 : i32
    %c0_i32_0 = arith.constant 0 : i32
    %c0_i32_1 = arith.constant 0 : i32
    return %c0_i32, %c0_i32_0 : i32, i32
  }
  func.func @transform_4(%arg0: i32) -> (i32, i32) {
    %c0_i32 = arith.constant 0 : i32
    %c0_i32_0 = arith.constant 0 : i32
    %c0_i32_1 = arith.constant 0 : i32
    return %c0_i32, %c0_i32_0 : i32, i32
  }
  func.func @transform_5(%arg0: i32) -> (i32, i32) {
    %c0_i32 = arith.constant 0 : i32
    %c0_i32_0 = arith.constant 0 : i32
    %c0_i32_1 = arith.constant 0 : i32
    return %c0_i32, %c0_i32_0 : i32, i32
  }
  func.func @transform_6(%arg0: i32) -> (i32, i32) {
    %c0_i32 = arith.constant 0 : i32
    %c0_i32_0 = arith.constant 0 : i32
    return %arg0, %c0_i32 : i32, i32
  }
}

</mosaic_0001>

<llo_original>
// kernel: bert_self_output.1
$region0: #{bert_self_output.1}
  #allocation0 [shape = 'u32[]', space=smem, size = 0x4, offset = 0x4, fixed_abs, tag = 'smem constant byte address 0x4 - core index']
  #allocation1 [shape = 'u32[144,128]{1,0:T(1,128)}', space=vmem, size = 0x12000, scoped, tag = 'internal scratch']
  %s0 = inlined_call_operand.hbm [shape: f32[16,32], index: 0, kind: input, shape index: {}]
  %s1 = inlined_call_operand.hbm [shape: f32[16,32], index: 1, kind: input, shape index: {}]
  %s2 = inlined_call_operand.hbm [shape: f32[32,32], index: 2, kind: input, shape index: {}]
  %s3 = inlined_call_operand.vmem [shape: f32[1,32], index: 3, kind: input, shape index: {}]
  %s4 = inlined_call_operand.vmem [shape: f32[1,32], index: 4, kind: input, shape index: {}]
  %s5 = inlined_call_operand.vmem [shape: f32[1,32], index: 5, kind: input, shape index: {}]
  %s6 = inlined_call_operand.hbm [shape: f32[16,32], index: 6, kind: output, shape index: {}]
  %s7 = sld [smem:[#allocation0]]
  $region46: #{bert_self_output.1} parent=0
    _
  %s9 = ssub.s32 1, %s7
  %s10 = scalar_select 0, %s9, %s7
  $region1: #{bert_self_output.1} parent=0
    #allocation2 [shape = 'u8[8192]{0}', space=vmem, size = 0x2000, scoped, tag = 'input window, operand 0, single buffered']
    #allocation3 [shape = 's32[1]{0}', space=sflag, size = 0x4, scoped, tag = 'scoped memory for bert_self_output.1']
    #allocation4 [shape = 's32[1]{0}', space=sflag, size = 0x4, scoped, tag = 'scoped memory for bert_self_output.1']
    #allocation5 [shape = 'u8[8192]{0}', space=vmem, size = 0x2000, scoped, tag = 'input window, operand 1, single buffered']
    #allocation6 [shape = 's32[1]{0}', space=sflag, size = 0x4, scoped, tag = 'scoped memory for bert_self_output.1']
    #allocation7 [shape = 'u8[16384]{0}', space=vmem, size = 0x4000, scoped, tag = 'input window, operand 2, single buffered']
    #allocation8 [shape = 'u8[8192]{0}', space=vmem, size = 0x2000, scoped, tag = 'output window, operand 0, single buffered']
    %11 = vsyncpa [#allocation3], 0
    %12 = vsyncpa [#allocation6], 0
    %13 = vsyncpa [#allocation4], 0
    // Predicated region
    $region2: #{bert_self_output.1} parent=1 // pred_check
      _
    $region3: #{bert_self_output.1} parent=1 // pred_check_branch
      %15 = sbr.rel (0) target = $region5
    $region4: #{bert_self_output.1} parent=1 // pred_region
      %s17 = ssub.s32 256, 256
      %18 = vsyncadd [#allocation3], %s17
      %s19 = sshll.u32 [#allocation2], 4
      %s20 = int_to_ptr.vmem [resolvable:$true] %s19
      %25 = dma.hbm_to_vmem [thread:$0]  %s0, 256, %s20, [#allocation3], 128, 128, 8
    $region5: #{bert_self_output.1} parent=1 // pred_fallthru
      _
    // Predicated region
    $region6: #{bert_self_output.1} parent=1 // pred_check
      _
    $region7: #{bert_self_output.1} parent=1 // pred_check_branch
      %27 = sbr.rel (0) target = $region9
    $region8: #{bert_self_output.1} parent=1 // pred_region
      %s29 = ssub.s32 256, 256
      %30 = vsyncadd [#allocation6], %s29
      %s31 = sshll.u32 [#allocation5], 4
      %s32 = int_to_ptr.vmem [resolvable:$true] %s31
      %37 = dma.hbm_to_vmem [thread:$0]  %s1, 256, %s32, [#allocation6], 128, 128, 8
    $region9: #{bert_self_output.1} parent=1 // pred_fallthru
      _
    // Predicated region
    $region10: #{bert_self_output.1} parent=1 // pred_check
      _
    $region11: #{bert_self_output.1} parent=1 // pred_check_branch
      %39 = sbr.rel (0) target = $region13
    $region12: #{bert_self_output.1} parent=1 // pred_region
      %s41 = ssub.s32 512, 512
      %42 = vsyncadd [#allocation6], %s41
      %s43 = sshll.u32 [#allocation7], 4
      %s44 = int_to_ptr.vmem [resolvable:$true] %s43
      %49 = dma.hbm_to_vmem [thread:$0]  %s2, 512, %s44, [#allocation6], 128, 128, 8
    $region13: #{bert_self_output.1} parent=1 // pred_fallthru
      _
    // Predicated region
    $region14: #{bert_self_output.1} parent=1 // pred_check
      _
    $region15: #{bert_self_output.1} parent=1 // pred_check_branch
      %51 = sbr.rel (0) target = $region17
    $region16: #{bert_self_output.1} parent=1 // pred_region
      _
    $region17: #{bert_self_output.1} parent=1 // pred_fallthru
      _
    // Predicated region
    $region18: #{bert_self_output.1} parent=1 // pred_check
      _
    $region19: #{bert_self_output.1} parent=1 // pred_check_branch
      %53 = sbr.rel (0) target = $region21
    $region20: #{bert_self_output.1} parent=1 // pred_region
      _
    $region21: #{bert_self_output.1} parent=1 // pred_fallthru
      _
    // Predicated region
    $region22: #{bert_self_output.1} parent=1 // pred_check
      _
    $region23: #{bert_self_output.1} parent=1 // pred_check_branch
      %55 = sbr.rel (0) target = $region25
    $region24: #{bert_self_output.1} parent=1 // pred_region
      _
    $region25: #{bert_self_output.1} parent=1 // pred_fallthru
      _
    // Predicated region
    $region26: #{bert_self_output.1} parent=1 // pred_check
      _
    $region27: #{bert_self_output.1} parent=1 // pred_check_branch
      %57 = sbr.rel (0) target = $region29
    $region28: #{bert_self_output.1} parent=1 // pred_region
      %58 = dma.done [#allocation3], 256
    $region29: #{bert_self_output.1} parent=1 // pred_fallthru
      _
    // Predicated region
    $region30: #{bert_self_output.1} parent=1 // pred_check
      _
    $region31: #{bert_self_output.1} parent=1 // pred_check_branch
      %60 = sbr.rel (0) target = $region33
    $region32: #{bert_self_output.1} parent=1 // pred_region
      %61 = dma.done [#allocation6], 256
    $region33: #{bert_self_output.1} parent=1 // pred_fallthru
      _
    // Predicated region
    $region34: #{bert_self_output.1} parent=1 // pred_check
      _
    $region35: #{bert_self_output.1} parent=1 // pred_check_branch
      %63 = sbr.rel (0) target = $region37
    $region36: #{bert_self_output.1} parent=1 // pred_region
      %64 = dma.done [#allocation6], 512
    $region37: #{bert_self_output.1} parent=1 // pred_fallthru
      _
    %v65 = vld [vmem:[#allocation2] sm:$0xff]
    %v66 = vld [vmem:[#allocation2 + $0x8] sm:$0xff]
    %v67 = vld [vmem:[#allocation7] sm:$0xff]
    %v68 = vld [vmem:[#allocation7 + $0x8] sm:$0xff]
    %v69 = vld [vmem:[#allocation7 + $0x10] sm:$0xff]
    %v70 = vld [vmem:[#allocation7 + $0x18] sm:$0xff]
    %v71 = vld [vmem:[%s3] sm:$0x1]
    %v72 = vld [vmem:[%s4] sm:$0x1]
    %v73 = vld [vmem:[%s5] sm:$0x1]
    %v75 = vlaneseq
    %v76 = vshrl.u32 %v75, 7
    %v77 = vsub.s32 0, %v76
    %v78 = vrot.slane %v71, %v77
    %vm80 = vcmask 261120
    %v82 = vsel %vm80, %v65, 0
    %v85 = vsel %vm80, %v66, 0
    %v88 = vsel %vm80, %v67, 0
    %v91 = vsel %vm80, %v68, 0
    %v94 = vsel %vm80, %v69, 0
    %v97 = vsel %vm80, %v70, 0
    %99 = vmatprep.subr.mxu0 0.0
    %100 = vmatpush1.xpose.msra.mxu0 0.0
    %101 = vmatprep.subr.mxu0 0.0
    %102 = vmatpush1.xpose.msra.mxu0 0.0
    %103 = vmatprep.subr.mxu0 0.0
    %104 = vmatpush1.xpose.msra.mxu0 0.0
    %105 = vmatprep.subr.mxu0 0.0
    %106 = vmatpush1.xpose.msra.mxu0 0.0
    %107 = vmatprep.subr.mxu0 0.0
    %108 = vmatpush1.xpose.msra.mxu0 0.0
    %109 = vmatprep.subr.mxu0 0.0
    %110 = vmatpush1.xpose.msra.mxu0 0.0
    %111 = vmatprep.subr.mxu0 0.0
    %112 = vmatpush1.xpose.msra.mxu0 0.0
    %113 = vmatprep.subr.mxu0 0.0
    %114 = vmatpush1.xpose.msra.mxu0 0.0
    %115 = vmatprep.subr.mxu0 0.0
    %116 = vmatpush1.xpose.msra.mxu0 0.0
    %117 = vmatprep.subr.mxu0 0.0
    %118 = vmatpush1.xpose.msra.mxu0 0.0
    %119 = vmatprep.subr.mxu0 0.0
    %120 = vmatpush1.xpose.msra.mxu0 0.0
    %121 = vmatprep.subr.mxu0 0.0
    %122 = vmatpush1.xpose.msra.mxu0 0.0
    %123 = vmatprep.subr.mxu0 0.0
    %124 = vmatpush1.xpose.msra.mxu0 %v97
    %125 = vmatprep.subr.mxu0 0.0
    %126 = vmatpush1.xpose.msra.mxu0 %v94
    %127 = vmatprep.subr.mxu0 0.0
    %128 = vmatpush1.xpose.msra.mxu0 %v91
    %129 = vmatprep.subr.mxu0 0.0
    %130 = vmatpush1.xpose.msra.mxu0 %v88
    %131 = vmatprep.subr.mxu0 0.0
    %132 = vmatpush2.xpose.msra.mxu0 0.0
    %133 = vmatprep.subr.mxu0 0.0
    %134 = vmatpush2.xpose.msra.mxu0 0.0
    %135 = vmatprep.subr.mxu0 0.0
    %136 = vmatpush2.xpose.msra.mxu0 0.0
    %137 = vmatprep.subr.mxu0 0.0
    %138 = vmatpush2.xpose.msra.mxu0 0.0
    %139 = vmatprep.subr.mxu0 0.0
    %140 = vmatpush2.xpose.msra.mxu0 0.0
    %141 = vmatprep.subr.mxu0 0.0
    %142 = vmatpush2.xpose.msra.mxu0 0.0
    %143 = vmatprep.subr.mxu0 0.0
    %144 = vmatpush2.xpose.msra.mxu0 0.0
    %145 = vmatprep.subr.mxu0 0.0
    %146 = vmatpush2.xpose.msra.mxu0 0.0
    %147 = vmatprep.subr.mxu0 0.0
    %148 = vmatpush2.xpose.msra.mxu0 0.0
    %149 = vmatprep.subr.mxu0 0.0
    %150 = vmatpush2.xpose.msra.mxu0 0.0
    %151 = vmatprep.subr.mxu0 0.0
    %152 = vmatpush2.xpose.msra.mxu0 0.0
    %153 = vmatprep.subr.mxu0 0.0
    %154 = vmatpush2.xpose.msra.mxu0 0.0
    %155 = vmatprep.subr.mxu0 0.0
    %156 = vmatpush2.xpose.msra.mxu0 0.0
    %157 = vmatprep.subr.mxu0 0.0
    %158 = vmatpush2.xpose.msra.mxu0 0.0
    %159 = vmatprep.subr.mxu0 0.0
    %160 = vmatpush2.xpose.msra.mxu0 0.0
    %161 = vmatprep.subr.mxu0 0.0
    %162 = vmatpush2.xpose.msra.mxu0 0.0
    %163 = vmatprep.mubr.f32.mxu0 0.0
    %164 = vmatmul.mubr.f32.gmra.mxu0 %v82
    %v165 = vpop.f32.mrf.mxu0
    %v166 = vadd.f32 %v78, %v165
    %v167 = vpop.f32.mrf.mxu0
    %168 = vmatprep.mubr.f32.mxu0 0.0
    %169 = vmatmul.mubr.f32.gmra.mxu0 %v85
    %v170 = vpop.f32.mrf.mxu0
    %v171 = vadd.f32 %v78, %v170
    %v172 = vpop.f32.mrf.mxu0
    %173 = vdwg.mxu0
    %v174 = vld [vmem:[#allocation5] sm:$0xff]
    %v175 = vld [vmem:[#allocation5 + $0x8] sm:$0xff]
    %v176 = vadd.f32 %v166, %v174
    %v177 = vadd.f32 %v171, %v175
    %v178 = vsel %vm80, %v176, 0.0
    %179 = vadd.xlane.f32.xlu0 %v178
    %v180 = vpop.xlane.xlu0 %179
    %v181 = vsel %vm80, %v177, 0.0
    %182 = vadd.xlane.f32.xlu0 %v181
    %v183 = vpop.xlane.xlu0 %182
    %v184 = vrcp.pop 32.0
    %v185 = vmul.f32 %v180, %v184
    %v186 = vmul.f32 %v183, %v184
    %v187 = vsub.f32 %v176, %v185
    %v188 = vsub.f32 %v177, %v186
    %v189 = vmul.f32 %v187, %v187
    %v190 = vmul.f32 %v188, %v188
    %v191 = vsel %vm80, %v189, 0.0
    %192 = vadd.xlane.f32.xlu0 %v191
    %v193 = vpop.xlane.xlu0 %192
    %v194 = vsel %vm80, %v190, 0.0
    %195 = vadd.xlane.f32.xlu0 %v194
    %v196 = vpop.xlane.xlu0 %195
    %v197 = vmul.f32 %v193, %v184
    %v198 = vmul.f32 %v196, %v184
    %v199 = vadd.f32 %v197, 1e-12
    %v200 = vadd.f32 %v198, 1e-12
    %v201 = vrsqrt.pop %v199
    %v202 = vrsqrt.pop %v200
    %v204 = vlaneseq
    %v205 = vshrl.u32 %v204, 7
    %v206 = vsub.s32 0, %v205
    %v207 = vrot.slane %v72, %v206
    %v209 = vmul.f32 %v201, %v207
    %v210 = vmul.f32 %v202, %v207
    %v211 = vmul.f32 %v187, %v209
    %v212 = vmul.f32 %v188, %v210
    %v214 = vlaneseq
    %v215 = vshrl.u32 %v214, 7
    %v216 = vsub.s32 0, %v215
    %v217 = vrot.slane %v73, %v216
    %v219 = vadd.f32 %v211, %v217
    %v220 = vadd.f32 %v212, %v217
    %221 = vst.msk [vmem:[#allocation8] sm:$0xff] %vm80, %v219
    %222 = vst.msk [vmem:[#allocation8 + $0x8] sm:$0xff] %vm80, %v220
    // Predicated region
    $region38: #{bert_self_output.1} parent=1 // pred_check
      _
    $region39: #{bert_self_output.1} parent=1 // pred_check_branch
      %224 = sbr.rel (0) target = $region41
    $region40: #{bert_self_output.1} parent=1 // pred_region
      %s226 = ssub.s32 256, 256
      %227 = vsyncadd [#allocation4], %s226
      %s228 = sshll.u32 [#allocation8], 4
      %s229 = int_to_ptr.vmem [resolvable:$true] %s228
      %234 = dma.vmem_to_hbm [thread:$0]  %s229, 256, %s6, [#allocation4], 128, 128, 8
    $region41: #{bert_self_output.1} parent=1 // pred_fallthru
      _
    // Predicated region
    $region42: #{bert_self_output.1} parent=1 // pred_check
      _
    $region43: #{bert_self_output.1} parent=1 // pred_check_branch
      %236 = sbr.rel (0) target = $region45
    $region44: #{bert_self_output.1} parent=1 // pred_region
      %237 = dma.done [#allocation4], 256
    $region45: #{bert_self_output.1} parent=1 // pred_fallthru
      _
    %238 = vsyncpa [#allocation3], 1
    %239 = vsyncpa [#allocation6], 1
    %240 = vsyncpa [#allocation4], 1

</llo_original>
